<compile_context>
chip_gen: v7x
topology: tpu7x:2x2x1
jax: 0.10.0
libtpu: 0.0.40
codegen_flags: <defaults>
</compile_context>

<pallas_src>
import functools
import math

import jax
import jax.numpy as jnp
from jax import lax
from jax.experimental import pallas as pl
from jax.experimental.pallas import tpu as pltpu


def _round_up(x, m):
    return (x + m - 1) // m * m


# -----------------------------------------------------------------------------
# Kernel
# -----------------------------------------------------------------------------
def node_attention_kernel(x_ref, wv_ref, w1_ref, w2_ref, shift_ref, o_ref, *, sub):
    """One (TILE_N, Cp) row-tile of the NodeAttentionBlock forward (eval).

    shift_ref rows: 0 -> V shift, 1 -> proj-layer-1 shift, 2 -> proj-layer-2 shift.
    The tile is processed in `sub`-row chunks to bound the vreg live set; weight
    loads are kept inside the chunk loop (cheap VMEM re-reads, no long live ranges).
    """
    n_sub = x_ref.shape[0] // sub

    def chunk(c, carry):
        r0 = pl.multiple_of(c * sub, sub)
        x = x_ref[pl.ds(r0, sub), :]                       # [sub, Cp], input dtype
        xb = x.astype(jnp.bfloat16)

        # V = BN(Linear(x)).  softmax over a size-1 axis == 1.0  ->  h = v exactly.
        v = jnp.dot(xb, wv_ref[...],
                    preferred_element_type=jnp.float32) + shift_ref[0:1, :]

        # proj layer 1: Linear + BN + ReLU   (Dropout = identity at inference)
        h1 = jnp.dot(v.astype(jnp.bfloat16), w1_ref[...],
                     preferred_element_type=jnp.float32) + shift_ref[1:2, :]
        h1 = jnp.maximum(h1, 0.0)

        # proj layer 2: Linear + BN          (Dropout = identity at inference)
        h2 = jnp.dot(h1.astype(jnp.bfloat16), w2_ref[...],
                     preferred_element_type=jnp.float32) + shift_ref[2:3, :]

        o_ref[pl.ds(r0, sub), :] = (h2 + x).astype(o_ref.dtype)   # residual
        return carry

    lax.fori_loop(0, n_sub, chunk, 0, unroll=True)


# -----------------------------------------------------------------------------
# Wrapper
# -----------------------------------------------------------------------------
def _vmem_ceiling_bytes():
    """Generation-aware VMEM cap: ~7/8 of physical (112 MiB on 128 MiB parts,
    56 MiB on v7x's 64 MiB per-TC VMEM)."""
    cap = 64 * 2**20
    try:
        info = pltpu.get_tpu_info()
        cap = int(getattr(info, "vmem_capacity_bytes", cap) or cap)
    except Exception:
        pass
    return int(cap * 7 // 8)


def node_attention_block(x, folded, *, tile_n=512, sub_rows=256):
    wv, w1, w2, shifts = folded["wv"], folded["w1"], folded["w2"], folded["shifts"]
    N, C = x.shape
    Cp = wv.shape[0]
    itemsize = jnp.dtype(x.dtype).itemsize
    align = max(8, 32 // itemsize)                 # 8 rows f32, 16 rows bf16

    # Row tiling: never exceed the array (full-extent block when N <= tile_n),
    # otherwise an aligned tile with a masked partial last grid step.
    if N <= tile_n:
        tn = N
        sub = tn
    else:
        tn = max(align, _round_up(min(tile_n, N), align))
        sub = min(_round_up(sub_rows, align), tn)
        if tn % sub != 0:
            sub = tn
    grid = (pl.cdiv(N, tn),)

    # Column padding only when C is not lane-dense already.
    pad_cols = (C != Cp)
    if pad_cols:
        x_in = jnp.zeros((N, Cp), x.dtype).at[:, :C].set(x)
    else:
        x_in = x

    w_bytes = (wv.size + w1.size + w2.size) * 2            # bf16, single-buffered
    io_tile_bytes = 2 * (2 * tn * Cp * itemsize)           # x + out, double-buffered
    interm_bytes = 4 * sub * Cp * 4                        # f32 v/h1/h2 (+headroom)
    vmem_need = w_bytes + shifts.size * 4 + io_tile_bytes + interm_bytes
    vmem_limit = int(min(_vmem_ceiling_bytes(), max(16 * 2**20, 4 * vmem_need)))

    flops = 2 * N * Cp * Cp * 3
    bytes_accessed = 2 * N * Cp * itemsize + w_bytes + shifts.size * 4

    const = lambda i: (0, 0)                               # VMEM-resident blocks
    out = pl.pallas_call(
        functools.partial(node_attention_kernel, sub=sub),
        out_shape=jax.ShapeDtypeStruct((N, Cp), x.dtype),
        grid_spec=pltpu.PrefetchScalarGridSpec(
            num_scalar_prefetch=0,
            grid=grid,
            in_specs=[
                pl.BlockSpec((tn, Cp), lambda i: (i, 0)),                          # x row tile
                pl.BlockSpec((Cp, Cp), const, pipeline_mode=pl.Buffered(1)),       # Wv
                pl.BlockSpec((Cp, Cp), const, pipeline_mode=pl.Buffered(1)),       # W1
                pl.BlockSpec((Cp, Cp), const, pipeline_mode=pl.Buffered(1)),       # W2
                pl.BlockSpec((8, Cp), const, pipeline_mode=pl.Buffered(1)),        # shifts
            ],
            out_specs=pl.BlockSpec((tn, Cp), lambda i: (i, 0)),
        ),
        compiler_params=pltpu.CompilerParams(
            dimension_semantics=("parallel",),
            vmem_limit_bytes=vmem_limit,
        ),
        cost_estimate=pl.CostEstimate(flops=flops, transcendentals=0,
                                      bytes_accessed=bytes_accessed),
    )(x_in, wv, w1, w2, shifts)

    return out[:, :C] if pad_cols else out


# -----------------------------------------------------------------------------
# Parameter construction / BN folding
# -----------------------------------------------------------------------------
def make_params(key, in_channels, out_channels):
    """Synthetic PyTorch-style parameters (Linear W,b + BatchNorm1d stats)."""
    def linear(k, fan_in, fan_out):
        kw, kb = jax.random.split(k)
        bound = 1.0 / math.sqrt(fan_in)
        W = jax.random.uniform(kw, (fan_out, fan_in), jnp.float32, -bound, bound)
        b = jax.random.uniform(kb, (fan_out,), jnp.float32, -bound, bound)
        return W, b

    def bn(k, ch):
        k1, k2, k3, k4 = jax.random.split(k, 4)
        return (1.0 + 0.1 * jax.random.normal(k1, (ch,), jnp.float32),   # gamma
                0.1 * jax.random.normal(k2, (ch,), jnp.float32),          # beta
                0.1 * jax.random.normal(k3, (ch,), jnp.float32),          # running_mean
                jax.random.uniform(k4, (ch,), jnp.float32, 0.5, 1.5))     # running_var

    keys = jax.random.split(key, 10)
    p = {}
    layer_defs = (("q", keys[0], keys[1], in_channels),
                  ("k", keys[2], keys[3], in_channels),
                  ("v", keys[4], keys[5], in_channels),
                  ("p1", keys[6], keys[7], in_channels),
                  ("p2", keys[8], keys[9], out_channels))
    for name, kl, kb, co in layer_defs:
        W, b = linear(kl, in_channels, co)
        gamma, beta, mean, var = bn(kb, co)
        p[name] = {"W": W, "b": b, "gamma": gamma, "beta": beta,
                   "mean": mean, "var": var}
    return p


def _fold(layer, eps=1e-5):
    """BN(x@W^T + b) == x@W' + shift  with  W' = W^T * scale (scale folded)."""
    scale = layer["gamma"] / jnp.sqrt(layer["var"] + eps)          # [out]
    W_fold = layer["W"].T * scale[None, :]                         # [in, out]
    shift = layer["beta"] - layer["mean"] * scale + layer["b"] * scale
    return W_fold, shift


def fold_params(params, in_channels, out_channels):
    assert out_channels == in_channels, "residual (h + x) requires out == in channels"
    Cp = _round_up(in_channels, 128)

    def pad_w(w):   # [in, out] -> [Cp, Cp] zero-padded, bf16 for the MXU
        full = jnp.zeros((Cp, Cp), jnp.float32).at[:w.shape[0], :w.shape[1]].set(w)
        return full.astype(jnp.bfloat16)

    def pad_s(s):   # [out] -> [Cp]
        return jnp.zeros((Cp,), jnp.float32).at[:s.shape[0]].set(s)

    wv, sv = _fold(params["v"])
    w1, s1 = _fold(params["p1"])
    w2, s2 = _fold(params["p2"])
    shifts = jnp.zeros((8, Cp), jnp.float32)
    shifts = shifts.at[0].set(pad_s(sv)).at[1].set(pad_s(s1)).at[2].set(pad_s(s2))
    return {"wv": pad_w(wv), "w1": pad_w(w1), "w2": pad_w(w2), "shifts": shifts}


# -----------------------------------------------------------------------------
# References
# -----------------------------------------------------------------------------
def node_attention_block_ref_matched(x, folded, C):
    """Pure-JAX mirror of the kernel math (same folded bf16 params, same I/O dtype)."""
    Cp = folded["wv"].shape[0]
    N = x.shape[0]
    xp = jnp.zeros((N, Cp), x.dtype).at[:, :C].set(x) if C != Cp else x
    xb = xp.astype(jnp.bfloat16)
    v = jnp.dot(xb, folded["wv"], preferred_element_type=jnp.float32) + folded["shifts"][0:1]
    h1 = jnp.maximum(
        jnp.dot(v.astype(jnp.bfloat16), folded["w1"],
                preferred_element_type=jnp.float32) + folded["shifts"][1:2], 0.0)
    h2 = jnp.dot(h1.astype(jnp.bfloat16), folded["w2"],
                 preferred_element_type=jnp.float32) + folded["shifts"][2:3]
    out = (h2 + xp.astype(jnp.float32)).astype(x.dtype)
    return out[:, :C]


def node_attention_block_ref_f32(x, params, eps=1e-5):
    """f32 pure-JAX mirror of the full PyTorch forward (eval BN, Dropout=id),
    including the (constant-1) Q/K/softmax path — semantic check."""
    def lin_bn(z, layer):
        y = z @ layer["W"].T + layer["b"]
        scale = layer["gamma"] / jnp.sqrt(layer["var"] + eps)
        return (y - layer["mean"]) * scale + layer["beta"]

    N, C = x.shape
    q = lin_bn(x, params["q"])[:, None, :]
    k = lin_bn(x, params["k"])[:, None, :]
    v = lin_bn(x, params["v"])[:, None, :]
    w = jnp.einsum("nij,nkj->nik", q, k) * (C ** (-0.5))          # [N,1,1]
    w = jax.nn.softmax(w, axis=-1)                                 # == ones
    h = jnp.einsum("nik,nkc->nic", w, v).reshape(N, C)
    h1 = jnp.maximum(lin_bn(h, params["p1"]), 0.0)
    h2 = lin_bn(h1, params["p2"])
    return h2 + x


# -----------------------------------------------------------------------------
if __name__ == "__main__":
    key = jax.random.PRNGKey(0)
    kx, kp, kx2, kp2, kx3 = jax.random.split(key, 5)

    # Case 1: small f32, C not a multiple of 128 (column-pad fallback path).
    N, C = 8, 32
    x = jax.random.normal(kx, (N, C), jnp.float32)
    params = make_params(kp, C, C)
    folded = fold_params(params, C, C)

    out = jax.block_until_ready(node_attention_block(x, folded))
    assert out.shape == (N, C) and out.dtype == jnp.float32

    ref_tight = node_attention_block_ref_matched(x, folded, C)
    assert bool(jnp.allclose(out, ref_tight, atol=1e-3, rtol=1e-3)), \
        "mismatch vs bf16-matched reference"
    ref_full = node_attention_block_ref_f32(x, params)
    assert bool(jnp.allclose(out, ref_full, atol=2e-2, rtol=2e-2)), \
        "mismatch vs f32 PyTorch-semantics reference"

    # Case 2: multi-tile rows with a masked partial last tile (no host row padding).
    N2 = 300
    x2 = jax.random.normal(kx2, (N2, C), jnp.float32)
    out2 = jax.block_until_ready(node_attention_block(x2, folded, tile_n=128))
    ref2 = node_attention_block_ref_matched(x2, folded, C)
    assert out2.shape == (N2, C)
    assert bool(jnp.allclose(out2, ref2, atol=1e-3, rtol=1e-3)), \
        "mismatch vs reference (multi-tile / partial last tile)"

    # Case 3: lane-dense C (multiple of 128) + bf16 I/O -> zero wrapper copies,
    # halved HBM traffic on the dominant x-in / out streams.
    N3, C3 = 256, 128
    params3 = make_params(kp2, C3, C3)
    folded3 = fold_params(params3, C3, C3)
    x3 = jax.random.normal(kx3, (N3, C3), jnp.float32).astype(jnp.bfloat16)
    out3 = jax.block_until_ready(node_attention_block(x3, folded3))
    assert out3.shape == (N3, C3) and out3.dtype == jnp.bfloat16
    ref3 = node_attention_block_ref_matched(x3, folded3, C3)
    assert bool(jnp.allclose(out3.astype(jnp.float32), ref3.astype(jnp.float32),
                             atol=3e-2, rtol=3e-2)), \
        "mismatch vs bf16-matched reference (bf16 I/O path)"

    print("KERNEL_OK")
</pallas_src>

<mosaic_0001>
module attributes {stable_mosaic.version = 11 : i64} {
  func.func @node_attention_kernel(%arg0: i32, %arg1: memref<8x128xf32, #tpu.memory_space<vmem>>, %arg2: memref<128x128xbf16, #tpu.memory_space<vmem>>, %arg3: memref<128x128xbf16, #tpu.memory_space<vmem>>, %arg4: memref<128x128xbf16, #tpu.memory_space<vmem>>, %arg5: memref<8x128xf32, #tpu.memory_space<vmem>>, %arg6: memref<8x128xf32, #tpu.memory_space<vmem>>) attributes {dimension_semantics = [#tpu.dimension_semantics<parallel>], iteration_bounds = array<i64: 1>, scalar_prefetch = 0 : i64, scratch_operands = 0 : i64, tpu.core_type = #tpu.core_type<tc>, window_params = [{transform_indices = @transform_0, window_bounds = array<i64: 8, 128>}, {pipeline_mode = #tpu.pipeline_mode<synchronous>, transform_indices = @transform_1, window_bounds = array<i64: 128, 128>}, {pipeline_mode = #tpu.pipeline_mode<synchronous>, transform_indices = @transform_2, window_bounds = array<i64: 128, 128>}, {pipeline_mode = #tpu.pipeline_mode<synchronous>, transform_indices = @transform_3, window_bounds = array<i64: 128, 128>}, {pipeline_mode = #tpu.pipeline_mode<synchronous>, transform_indices = @transform_4, window_bounds = array<i64: 8, 128>}, {transform_indices = @transform_5, window_bounds = array<i64: 8, 128>}]} {
    %c0_i32 = arith.constant 0 : i32
    %c8_i32 = arith.constant 8 : i32
    %0 = arith.muli %c0_i32, %c8_i32 : i32
    %1 = tpu.assume_multiple %0, 8 : i32
    %2 = arith.index_cast %1 : i32 to index
    %c0 = arith.constant 0 : index
    %3 = vector.load %arg1[%2, %c0] : memref<8x128xf32, #tpu.memory_space<vmem>>, vector<8x128xf32>
    %4 = arith.truncf %3 : vector<8x128xf32> to vector<8x128xbf16>
    %c0_0 = arith.constant 0 : index
    %c0_1 = arith.constant 0 : index
    %5 = vector.load %arg2[%c0_0, %c0_1] : memref<128x128xbf16, #tpu.memory_space<vmem>>, vector<128x128xbf16>
    %cst = arith.constant dense<0.000000e+00> : vector<8x128xf32>
    %6 = tpu.matmul %4, %5, %cst {dimension_numbers = #tpu.dot_dimension_numbers<[1], [0], [0], [1], [0, 0, 1, 1], [], []>} : vector<8x128xbf16>, vector<128x128xbf16>, vector<8x128xf32> -> vector<8x128xf32>
    %c0_2 = arith.constant 0 : index
    %c0_3 = arith.constant 0 : index
    %7 = vector.load %arg5[%c0_2, %c0_3] : memref<8x128xf32, #tpu.memory_space<vmem>>, vector<1x128xf32>
    %8 = vector.broadcast %7 : vector<1x128xf32> to vector<8x128xf32>
    %9 = arith.addf %6, %8 : vector<8x128xf32>
    %10 = arith.truncf %9 : vector<8x128xf32> to vector<8x128xbf16>
    %c0_4 = arith.constant 0 : index
    %c0_5 = arith.constant 0 : index
    %11 = vector.load %arg3[%c0_4, %c0_5] : memref<128x128xbf16, #tpu.memory_space<vmem>>, vector<128x128xbf16>
    %cst_6 = arith.constant dense<0.000000e+00> : vector<8x128xf32>
    %12 = tpu.matmul %10, %11, %cst_6 {dimension_numbers = #tpu.dot_dimension_numbers<[1], [0], [0], [1], [0, 0, 1, 1], [], []>} : vector<8x128xbf16>, vector<128x128xbf16>, vector<8x128xf32> -> vector<8x128xf32>
    %c1 = arith.constant 1 : index
    %c0_7 = arith.constant 0 : index
    %13 = vector.load %arg5[%c1, %c0_7] : memref<8x128xf32, #tpu.memory_space<vmem>>, vector<1x128xf32>
    %14 = vector.broadcast %13 : vector<1x128xf32> to vector<8x128xf32>
    %15 = arith.addf %12, %14 : vector<8x128xf32>
    %cst_8 = arith.constant 0.000000e+00 : f32
    %16 = vector.broadcast %cst_8 : f32 to vector<8x128xf32>
    %17 = arith.maximumf %15, %16 : vector<8x128xf32>
    %18 = arith.truncf %17 : vector<8x128xf32> to vector<8x128xbf16>
    %c0_9 = arith.constant 0 : index
    %c0_10 = arith.constant 0 : index
    %19 = vector.load %arg4[%c0_9, %c0_10] : memref<128x128xbf16, #tpu.memory_space<vmem>>, vector<128x128xbf16>
    %cst_11 = arith.constant dense<0.000000e+00> : vector<8x128xf32>
    %20 = tpu.matmul %18, %19, %cst_11 {dimension_numbers = #tpu.dot_dimension_numbers<[1], [0], [0], [1], [0, 0, 1, 1], [], []>} : vector<8x128xbf16>, vector<128x128xbf16>, vector<8x128xf32> -> vector<8x128xf32>
    %c2 = arith.constant 2 : index
    %c0_12 = arith.constant 0 : index
    %21 = vector.load %arg5[%c2, %c0_12] : memref<8x128xf32, #tpu.memory_space<vmem>>, vector<1x128xf32>
    %22 = vector.broadcast %21 : vector<1x128xf32> to vector<8x128xf32>
    %23 = arith.addf %20, %22 : vector<8x128xf32>
    %24 = arith.addf %23, %3 : vector<8x128xf32>
    %25 = arith.index_cast %1 : i32 to index
    %c0_13 = arith.constant 0 : index
    %26 = vector.load %arg6[%25, %c0_13] : memref<8x128xf32, #tpu.memory_space<vmem>>, vector<8x128xf32>
    tpu.vector_store %arg6[%25, %c0_13], %24 {strides = array<i32>} : memref<8x128xf32, #tpu.memory_space<vmem>>, vector<8x128xf32>,
    %c1_i32 = arith.constant 1 : i32
    return
  }
  func.func @transform_0(%arg0: i32) -> (i32, i32) {
    %c0_i32 = arith.constant 0 : i32
    %c0_i32_0 = arith.constant 0 : i32
    return %arg0, %c0_i32 : i32, i32
  }
  func.func @transform_1(%arg0: i32) -> (i32, i32) {
    %c0_i32 = arith.constant 0 : i32
    %c0_i32_0 = arith.constant 0 : i32
    %c0_i32_1 = arith.constant 0 : i32
    return %c0_i32, %c0_i32_0 : i32, i32
  }
  func.func @transform_2(%arg0: i32) -> (i32, i32) {
    %c0_i32 = arith.constant 0 : i32
    %c0_i32_0 = arith.constant 0 : i32
    %c0_i32_1 = arith.constant 0 : i32
    return %c0_i32, %c0_i32_0 : i32, i32
  }
  func.func @transform_3(%arg0: i32) -> (i32, i32) {
    %c0_i32 = arith.constant 0 : i32
    %c0_i32_0 = arith.constant 0 : i32
    %c0_i32_1 = arith.constant 0 : i32
    return %c0_i32, %c0_i32_0 : i32, i32
  }
  func.func @transform_4(%arg0: i32) -> (i32, i32) {
    %c0_i32 = arith.constant 0 : i32
    %c0_i32_0 = arith.constant 0 : i32
    %c0_i32_1 = arith.constant 0 : i32
    return %c0_i32, %c0_i32_0 : i32, i32
  }
  func.func @transform_5(%arg0: i32) -> (i32, i32) {
    %c0_i32 = arith.constant 0 : i32
    %c0_i32_0 = arith.constant 0 : i32
    return %arg0, %c0_i32 : i32, i32
  }
}

</mosaic_0001>

<llo_original>
// kernel: tpu_custom_call.1
$region0: #{tpu_custom_call.1}
  #allocation0 [shape = 'u32[]', space=smem, size = 0x4, offset = 0x4, fixed_abs, tag = 'smem constant byte address 0x4 - core index']
  #allocation1 [shape = 'u32[144,128]{1,0:T(1,128)}', space=vmem, size = 0x12000, scoped, tag = 'internal scratch']
  %s0 = inlined_call_operand.hbm [shape: f32[8,128], index: 0, kind: input, shape index: {}]
  %s1 = inlined_call_operand.hbm [shape: bf16[128,128], index: 1, kind: input, shape index: {}]
  %s2 = inlined_call_operand.hbm [shape: bf16[128,128], index: 2, kind: input, shape index: {}]
  %s3 = inlined_call_operand.hbm [shape: bf16[128,128], index: 3, kind: input, shape index: {}]
  %s4 = inlined_call_operand.vmem [shape: f32[8,128], index: 4, kind: input, shape index: {}]
  %s5 = inlined_call_operand.hbm [shape: f32[8,128], index: 5, kind: output, shape index: {}]
  %s6 = sld [smem:[#allocation0]]
  $region46: #{tpu_custom_call.1} parent=0
    _
  %s8 = ssub.s32 1, %s6
  %s9 = scalar_select 0, %s8, %s6
  $region1: #{tpu_custom_call.1} parent=0
    #allocation2 [shape = 'u8[4096]{0}', space=vmem, size = 0x1000, scoped, tag = 'input window, operand 0, single buffered']
    #allocation3 [shape = 's32[1]{0}', space=sflag, size = 0x4, scoped, tag = 'scoped memory for tpu_custom_call.1']
    #allocation4 [shape = 's32[1]{0}', space=sflag, size = 0x4, scoped, tag = 'scoped memory for tpu_custom_call.1']
    #allocation5 [shape = 'u8[32768]{0}', space=vmem, size = 0x8000, scoped, tag = 'input window, operand 1, single buffered']
    #allocation6 [shape = 's32[1]{0}', space=sflag, size = 0x4, scoped, tag = 'scoped memory for tpu_custom_call.1']
    #allocation7 [shape = 'u8[32768]{0}', space=vmem, size = 0x8000, scoped, tag = 'input window, operand 2, single buffered']
    #allocation8 [shape = 'u8[32768]{0}', space=vmem, size = 0x8000, scoped, tag = 'input window, operand 3, single buffered']
    #allocation9 [shape = 's32[1]{0}', space=sflag, size = 0x4, scoped, tag = 'scoped memory for tpu_custom_call.1']
    #allocation10 [shape = 'u8[4096]{0}', space=vmem, size = 0x1000, scoped, tag = 'output window, operand 0, single buffered']
    %10 = vsyncpa [#allocation3], 0
    %11 = vsyncpa [#allocation6], 0
    %12 = vsyncpa [#allocation9], 0
    %13 = vsyncpa [#allocation4], 0
    // Predicated region
    $region2: #{tpu_custom_call.1} parent=1 // pred_check
      _
    $region3: #{tpu_custom_call.1} parent=1 // pred_check_branch
      %15 = sbr.rel (0) target = $region5
    $region4: #{tpu_custom_call.1} parent=1 // pred_region
      %s17 = ssub.s32 128, 128
      %18 = vsyncadd [#allocation3], %s17
      %s20 = sshll.u32 [#allocation2], 4
      %s21 = int_to_ptr.vmem [resolvable:$true] %s20
      %23 = dma.hbm_to_vmem [thread:$0]  %s0, 128, %s21, [#allocation3]
    $region5: #{tpu_custom_call.1} parent=1 // pred_fallthru
      _
    // Predicated region
    $region6: #{tpu_custom_call.1} parent=1 // pred_check
      _
    $region7: #{tpu_custom_call.1} parent=1 // pred_check_branch
      %25 = sbr.rel (0) target = $region9
    $region8: #{tpu_custom_call.1} parent=1 // pred_region
      %s27 = ssub.s32 1024, 1024
      %28 = vsyncadd [#allocation6], %s27
      %s29 = sshll.u32 [#allocation5], 4
      %s30 = int_to_ptr.vmem [resolvable:$true] %s29
      %35 = dma.hbm_to_vmem [thread:$0]  %s1, 1024, %s30, [#allocation6], 64, 64, 4
    $region9: #{tpu_custom_call.1} parent=1 // pred_fallthru
      _
    // Predicated region
    $region10: #{tpu_custom_call.1} parent=1 // pred_check
      _
    $region11: #{tpu_custom_call.1} parent=1 // pred_check_branch
      %37 = sbr.rel (0) target = $region13
    $region12: #{tpu_custom_call.1} parent=1 // pred_region
      %s39 = ssub.s32 1024, 1024
      %40 = vsyncadd [#allocation6], %s39
      %s41 = sshll.u32 [#allocation7], 4
      %s42 = int_to_ptr.vmem [resolvable:$true] %s41
      %47 = dma.hbm_to_vmem [thread:$0]  %s2, 1024, %s42, [#allocation6], 64, 64, 4
    $region13: #{tpu_custom_call.1} parent=1 // pred_fallthru
      _
    // Predicated region
    $region14: #{tpu_custom_call.1} parent=1 // pred_check
      _
    $region15: #{tpu_custom_call.1} parent=1 // pred_check_branch
      %49 = sbr.rel (0) target = $region17
    $region16: #{tpu_custom_call.1} parent=1 // pred_region
      %s51 = ssub.s32 1024, 1024
      %52 = vsyncadd [#allocation9], %s51
      %s53 = sshll.u32 [#allocation8], 4
      %s54 = int_to_ptr.vmem [resolvable:$true] %s53
      %59 = dma.hbm_to_vmem [thread:$0]  %s3, 1024, %s54, [#allocation9], 64, 64, 4
    $region17: #{tpu_custom_call.1} parent=1 // pred_fallthru
      _
    // Predicated region
    $region18: #{tpu_custom_call.1} parent=1 // pred_check
      _
    $region19: #{tpu_custom_call.1} parent=1 // pred_check_branch
      %61 = sbr.rel (0) target = $region21
    $region20: #{tpu_custom_call.1} parent=1 // pred_region
      _
    $region21: #{tpu_custom_call.1} parent=1 // pred_fallthru
      _
    // Predicated region
    $region22: #{tpu_custom_call.1} parent=1 // pred_check
      _
    $region23: #{tpu_custom_call.1} parent=1 // pred_check_branch
      %63 = sbr.rel (0) target = $region25
    $region24: #{tpu_custom_call.1} parent=1 // pred_region
      %64 = dma.done [#allocation3], 128
    $region25: #{tpu_custom_call.1} parent=1 // pred_fallthru
      _
    // Predicated region
    $region26: #{tpu_custom_call.1} parent=1 // pred_check
      _
    $region27: #{tpu_custom_call.1} parent=1 // pred_check_branch
      %66 = sbr.rel (0) target = $region29
    $region28: #{tpu_custom_call.1} parent=1 // pred_region
      %67 = dma.done [#allocation6], 1024
    $region29: #{tpu_custom_call.1} parent=1 // pred_fallthru
      _
    // Predicated region
    $region30: #{tpu_custom_call.1} parent=1 // pred_check
      _
    $region31: #{tpu_custom_call.1} parent=1 // pred_check_branch
      %69 = sbr.rel (0) target = $region33
    $region32: #{tpu_custom_call.1} parent=1 // pred_region
      %70 = dma.done [#allocation6], 1024
    $region33: #{tpu_custom_call.1} parent=1 // pred_fallthru
      _
    // Predicated region
    $region34: #{tpu_custom_call.1} parent=1 // pred_check
      _
    $region35: #{tpu_custom_call.1} parent=1 // pred_check_branch
      %72 = sbr.rel (0) target = $region37
    $region36: #{tpu_custom_call.1} parent=1 // pred_region
      %73 = dma.done [#allocation9], 1024
    $region37: #{tpu_custom_call.1} parent=1 // pred_fallthru
      _
    %v75 = vld [vmem:[#allocation2] sm:$0xff]
    %v76 = vpack.c.bf16 %v75, %v75
    %v77 = vld [vmem:[#allocation5] sm:$0xf]
    %v78 = vld [vmem:[#allocation5 + $0x4] sm:$0xf]
    %v79 = vld [vmem:[#allocation5 + $0x8] sm:$0xf]
    %v80 = vld [vmem:[#allocation5 + $0xc] sm:$0xf]
    %v81 = vld [vmem:[#allocation5 + $0x10] sm:$0xf]
    %v82 = vld [vmem:[#allocation5 + $0x14] sm:$0xf]
    %v83 = vld [vmem:[#allocation5 + $0x18] sm:$0xf]
    %v84 = vld [vmem:[#allocation5 + $0x1c] sm:$0xf]
    %v85 = vld [vmem:[#allocation5 + $0x20] sm:$0xf]
    %v86 = vld [vmem:[#allocation5 + $0x24] sm:$0xf]
    %v87 = vld [vmem:[#allocation5 + $0x28] sm:$0xf]
    %v88 = vld [vmem:[#allocation5 + $0x2c] sm:$0xf]
    %v89 = vld [vmem:[#allocation5 + $0x30] sm:$0xf]
    %v90 = vld [vmem:[#allocation5 + $0x34] sm:$0xf]
    %v91 = vld [vmem:[#allocation5 + $0x38] sm:$0xf]
    %v92 = vld [vmem:[#allocation5 + $0x3c] sm:$0xf]
    %v93 = vld [vmem:[%s4] sm:$0x1]
    %v94 = vlaneseq
    %v95 = vshrl.u32 %v94, 7
    %v96 = vsub.s32 0, %v95
    %v97 = vrot.slane %v93, %v96
    %v114 = vunpack.c.l.b16 %v77
    %v115 = vunpack.c.l.b16 %v78
    %v116 = vunpack.c.l.b16 %v79
    %v117 = vunpack.c.l.b16 %v80
    %v118 = vunpack.c.l.b16 %v81
    %v119 = vunpack.c.l.b16 %v82
    %v120 = vunpack.c.l.b16 %v83
    %v121 = vunpack.c.l.b16 %v84
    %v122 = vunpack.c.l.b16 %v85
    %v123 = vunpack.c.l.b16 %v86
    %v124 = vunpack.c.l.b16 %v87
    %v125 = vunpack.c.l.b16 %v88
    %v126 = vunpack.c.l.b16 %v89
    %v127 = vunpack.c.l.b16 %v90
    %v128 = vunpack.c.l.b16 %v91
    %v129 = vunpack.c.l.b16 %v92
    %v130 = vpack.c.b16 %v115, %v114
    %v131 = vpack.c.b16 %v117, %v116
    %v132 = vpack.c.b16 %v119, %v118
    %v133 = vpack.c.b16 %v121, %v120
    %v134 = vpack.c.b16 %v123, %v122
    %v135 = vpack.c.b16 %v125, %v124
    %v136 = vpack.c.b16 %v127, %v126
    %v137 = vpack.c.b16 %v129, %v128
    %146 = vmatprep.subr.bf16.mxu0 0
    %147 = vmatpush1.bf16.msra.mxu0 %v130
    %148 = vmatprep.subr.bf16.mxu0 0
    %149 = vmatpush1.bf16.msra.mxu0 %v131
    %150 = vmatprep.subr.bf16.mxu0 0
    %151 = vmatpush1.bf16.msra.mxu0 %v132
    %152 = vmatprep.subr.bf16.mxu0 0
    %153 = vmatpush1.bf16.msra.mxu0 %v133
    %154 = vmatprep.subr.bf16.mxu0 0
    %155 = vmatpush1.bf16.msra.mxu0 %v134
    %156 = vmatprep.subr.bf16.mxu0 0
    %157 = vmatpush1.bf16.msra.mxu0 %v135
    %158 = vmatprep.subr.bf16.mxu0 0
    %159 = vmatpush1.bf16.msra.mxu0 %v136
    %160 = vmatprep.subr.bf16.mxu0 0
    %161 = vmatpush1.bf16.msra.mxu0 %v137
    %162 = vmatprep.subr.bf16.mxu0 0
    %163 = vmatpush1.bf16.msra.mxu0 0
    %164 = vmatprep.subr.bf16.mxu0 0
    %165 = vmatpush1.bf16.msra.mxu0 0
    %166 = vmatprep.subr.bf16.mxu0 0
    %167 = vmatpush1.bf16.msra.mxu0 0
    %168 = vmatprep.subr.bf16.mxu0 0
    %169 = vmatpush1.bf16.msra.mxu0 0
    %170 = vmatprep.subr.bf16.mxu0 0
    %171 = vmatpush1.bf16.msra.mxu0 0
    %172 = vmatprep.subr.bf16.mxu0 0
    %173 = vmatpush1.bf16.msra.mxu0 0
    %174 = vmatprep.subr.bf16.mxu0 0
    %175 = vmatpush1.bf16.msra.mxu0 0
    %176 = vmatprep.subr.bf16.mxu0 0
    %177 = vmatpush1.bf16.msra.mxu0 0
    %178 = vmatprep.mubr.bf16.mxu0 0
    %179 = vmatmul.mubr.bf16.gmra.mrb[0].mxu0 %v76
    %v180 = vpop.f32.mrb[0].mxu0
    %v181 = vadd.f32 %v97, %v180
    %v182 = vpop.f32.mrb[0].mxu0
    %v183 = vpop.f32.mrb[0].mxu0
    %v184 = vpop.f32.mrb[0].mxu0
    %185 = vdwg.mxu0
    %v186 = vpack.c.bf16 %v181, %v181
    %v187 = vld [vmem:[#allocation7] sm:$0xf]
    %v188 = vld [vmem:[#allocation7 + $0x4] sm:$0xf]
    %v189 = vld [vmem:[#allocation7 + $0x8] sm:$0xf]
    %v190 = vld [vmem:[#allocation7 + $0xc] sm:$0xf]
    %v191 = vld [vmem:[#allocation7 + $0x10] sm:$0xf]
    %v192 = vld [vmem:[#allocation7 + $0x14] sm:$0xf]
    %v193 = vld [vmem:[#allocation7 + $0x18] sm:$0xf]
    %v194 = vld [vmem:[#allocation7 + $0x1c] sm:$0xf]
    %v195 = vld [vmem:[#allocation7 + $0x20] sm:$0xf]
    %v196 = vld [vmem:[#allocation7 + $0x24] sm:$0xf]
    %v197 = vld [vmem:[#allocation7 + $0x28] sm:$0xf]
    %v198 = vld [vmem:[#allocation7 + $0x2c] sm:$0xf]
    %v199 = vld [vmem:[#allocation7 + $0x30] sm:$0xf]
    %v200 = vld [vmem:[#allocation7 + $0x34] sm:$0xf]
    %v201 = vld [vmem:[#allocation7 + $0x38] sm:$0xf]
    %v202 = vld [vmem:[#allocation7 + $0x3c] sm:$0xf]
    %v203 = vld [vmem:[%s4 + $0x1] sm:$0x1]
    %v204 = vlaneseq
    %v205 = vshrl.u32 %v204, 7
    %v206 = vsub.s32 0, %v205
    %v207 = vrot.slane %v203, %v206
    %v224 = vunpack.c.l.b16 %v187
    %v225 = vunpack.c.l.b16 %v188
    %v226 = vunpack.c.l.b16 %v189
    %v227 = vunpack.c.l.b16 %v190
    %v228 = vunpack.c.l.b16 %v191
    %v229 = vunpack.c.l.b16 %v192
    %v230 = vunpack.c.l.b16 %v193
    %v231 = vunpack.c.l.b16 %v194
    %v232 = vunpack.c.l.b16 %v195
    %v233 = vunpack.c.l.b16 %v196
    %v234 = vunpack.c.l.b16 %v197
    %v235 = vunpack.c.l.b16 %v198
    %v236 = vunpack.c.l.b16 %v199
    %v237 = vunpack.c.l.b16 %v200
    %v238 = vunpack.c.l.b16 %v201
    %v239 = vunpack.c.l.b16 %v202
    %v240 = vpack.c.b16 %v225, %v224
    %v241 = vpack.c.b16 %v227, %v226
    %v242 = vpack.c.b16 %v229, %v228
    %v243 = vpack.c.b16 %v231, %v230
    %v244 = vpack.c.b16 %v233, %v232
    %v245 = vpack.c.b16 %v235, %v234
    %v246 = vpack.c.b16 %v237, %v236
    %v247 = vpack.c.b16 %v239, %v238
    %256 = vmatprep.subr.bf16.mxu0 0
    %257 = vmatpush1.bf16.msra.mxu0 %v240
    %258 = vmatprep.subr.bf16.mxu0 0
    %259 = vmatpush1.bf16.msra.mxu0 %v241
    %260 = vmatprep.subr.bf16.mxu0 0
    %261 = vmatpush1.bf16.msra.mxu0 %v242
    %262 = vmatprep.subr.bf16.mxu0 0
    %263 = vmatpush1.bf16.msra.mxu0 %v243
    %264 = vmatprep.subr.bf16.mxu0 0
    %265 = vmatpush1.bf16.msra.mxu0 %v244
    %266 = vmatprep.subr.bf16.mxu0 0
    %267 = vmatpush1.bf16.msra.mxu0 %v245
    %268 = vmatprep.subr.bf16.mxu0 0
    %269 = vmatpush1.bf16.msra.mxu0 %v246
    %270 = vmatprep.subr.bf16.mxu0 0
    %271 = vmatpush1.bf16.msra.mxu0 %v247
    %272 = vmatprep.subr.bf16.mxu0 0
    %273 = vmatpush1.bf16.msra.mxu0 0
    %274 = vmatprep.subr.bf16.mxu0 0
    %275 = vmatpush1.bf16.msra.mxu0 0
    %276 = vmatprep.subr.bf16.mxu0 0
    %277 = vmatpush1.bf16.msra.mxu0 0
    %278 = vmatprep.subr.bf16.mxu0 0
    %279 = vmatpush1.bf16.msra.mxu0 0
    %280 = vmatprep.subr.bf16.mxu0 0
    %281 = vmatpush1.bf16.msra.mxu0 0
    %282 = vmatprep.subr.bf16.mxu0 0
    %283 = vmatpush1.bf16.msra.mxu0 0
    %284 = vmatprep.subr.bf16.mxu0 0
    %285 = vmatpush1.bf16.msra.mxu0 0
    %286 = vmatprep.subr.bf16.mxu0 0
    %287 = vmatpush1.bf16.msra.mxu0 0
    %288 = vmatprep.mubr.bf16.mxu0 0
    %289 = vmatmul.mubr.bf16.gmra.mrb[0].mxu0 %v186
    %v290 = vpop.f32.mrb[0].mxu0
    %v291 = vadd.f32 %v207, %v290
    %v292 = vpop.f32.mrb[0].mxu0
    %v293 = vpop.f32.mrb[0].mxu0
    %v294 = vpop.f32.mrb[0].mxu0
    %295 = vdwg.mxu0
    %v296 = vmax.f32 %v291, 0.0
    %v297 = vpack.c.bf16 %v296, %v296
    %v298 = vld [vmem:[#allocation8] sm:$0xf]
    %v299 = vld [vmem:[#allocation8 + $0x4] sm:$0xf]
    %v300 = vld [vmem:[#allocation8 + $0x8] sm:$0xf]
    %v301 = vld [vmem:[#allocation8 + $0xc] sm:$0xf]
    %v302 = vld [vmem:[#allocation8 + $0x10] sm:$0xf]
    %v303 = vld [vmem:[#allocation8 + $0x14] sm:$0xf]
    %v304 = vld [vmem:[#allocation8 + $0x18] sm:$0xf]
    %v305 = vld [vmem:[#allocation8 + $0x1c] sm:$0xf]
    %v306 = vld [vmem:[#allocation8 + $0x20] sm:$0xf]
    %v307 = vld [vmem:[#allocation8 + $0x24] sm:$0xf]
    %v308 = vld [vmem:[#allocation8 + $0x28] sm:$0xf]
    %v309 = vld [vmem:[#allocation8 + $0x2c] sm:$0xf]
    %v310 = vld [vmem:[#allocation8 + $0x30] sm:$0xf]
    %v311 = vld [vmem:[#allocation8 + $0x34] sm:$0xf]
    %v312 = vld [vmem:[#allocation8 + $0x38] sm:$0xf]
    %v313 = vld [vmem:[#allocation8 + $0x3c] sm:$0xf]
    %v314 = vld [vmem:[%s4 + $0x2] sm:$0x1]
    %v315 = vlaneseq
    %v316 = vshrl.u32 %v315, 7
    %v317 = vsub.s32 0, %v316
    %v318 = vrot.slane %v314, %v317
    %v335 = vunpack.c.l.b16 %v298
    %v336 = vunpack.c.l.b16 %v299
    %v337 = vunpack.c.l.b16 %v300
    %v338 = vunpack.c.l.b16 %v301
    %v339 = vunpack.c.l.b16 %v302
    %v340 = vunpack.c.l.b16 %v303
    %v341 = vunpack.c.l.b16 %v304
    %v342 = vunpack.c.l.b16 %v305
    %v343 = vunpack.c.l.b16 %v306
    %v344 = vunpack.c.l.b16 %v307
    %v345 = vunpack.c.l.b16 %v308
    %v346 = vunpack.c.l.b16 %v309
    %v347 = vunpack.c.l.b16 %v310
    %v348 = vunpack.c.l.b16 %v311
    %v349 = vunpack.c.l.b16 %v312
    %v350 = vunpack.c.l.b16 %v313
    %v351 = vpack.c.b16 %v336, %v335
    %v352 = vpack.c.b16 %v338, %v337
    %v353 = vpack.c.b16 %v340, %v339
    %v354 = vpack.c.b16 %v342, %v341
    %v355 = vpack.c.b16 %v344, %v343
    %v356 = vpack.c.b16 %v346, %v345
    %v357 = vpack.c.b16 %v348, %v347
    %v358 = vpack.c.b16 %v350, %v349
    %367 = vmatprep.subr.bf16.mxu0 0
    %368 = vmatpush1.bf16.msra.mxu0 %v351
    %369 = vmatprep.subr.bf16.mxu0 0
    %370 = vmatpush1.bf16.msra.mxu0 %v352
    %371 = vmatprep.subr.bf16.mxu0 0
    %372 = vmatpush1.bf16.msra.mxu0 %v353
    %373 = vmatprep.subr.bf16.mxu0 0
    %374 = vmatpush1.bf16.msra.mxu0 %v354
    %375 = vmatprep.subr.bf16.mxu0 0
    %376 = vmatpush1.bf16.msra.mxu0 %v355
    %377 = vmatprep.subr.bf16.mxu0 0
    %378 = vmatpush1.bf16.msra.mxu0 %v356
    %379 = vmatprep.subr.bf16.mxu0 0
    %380 = vmatpush1.bf16.msra.mxu0 %v357
    %381 = vmatprep.subr.bf16.mxu0 0
    %382 = vmatpush1.bf16.msra.mxu0 %v358
    %383 = vmatprep.subr.bf16.mxu0 0
    %384 = vmatpush1.bf16.msra.mxu0 0
    %385 = vmatprep.subr.bf16.mxu0 0
    %386 = vmatpush1.bf16.msra.mxu0 0
    %387 = vmatprep.subr.bf16.mxu0 0
    %388 = vmatpush1.bf16.msra.mxu0 0
    %389 = vmatprep.subr.bf16.mxu0 0
    %390 = vmatpush1.bf16.msra.mxu0 0
    %391 = vmatprep.subr.bf16.mxu0 0
    %392 = vmatpush1.bf16.msra.mxu0 0
    %393 = vmatprep.subr.bf16.mxu0 0
    %394 = vmatpush1.bf16.msra.mxu0 0
    %395 = vmatprep.subr.bf16.mxu0 0
    %396 = vmatpush1.bf16.msra.mxu0 0
    %397 = vmatprep.subr.bf16.mxu0 0
    %398 = vmatpush1.bf16.msra.mxu0 0
    %399 = vmatprep.mubr.bf16.mxu0 0
    %400 = vmatmul.mubr.bf16.gmra.mrb[0].mxu0 %v297
    %v401 = vpop.f32.mrb[0].mxu0
    %v402 = vadd.f32 %v318, %v401
    %v403 = vpop.f32.mrb[0].mxu0
    %v404 = vpop.f32.mrb[0].mxu0
    %v405 = vpop.f32.mrb[0].mxu0
    %406 = vdwg.mxu0
    %v407 = vadd.f32 %v402, %v75
    %408 = vst [vmem:[#allocation10] sm:$0xff] %v407
    // Predicated region
    $region38: #{tpu_custom_call.1} parent=1 // pred_check
      _
    $region39: #{tpu_custom_call.1} parent=1 // pred_check_branch
      %410 = sbr.rel (0) target = $region41
    $region40: #{tpu_custom_call.1} parent=1 // pred_region
      %s412 = ssub.s32 128, 128
      %413 = vsyncadd [#allocation4], %s412
      %s415 = sshll.u32 [#allocation10], 4
      %s416 = int_to_ptr.vmem [resolvable:$true] %s415
      %418 = dma.vmem_to_hbm [thread:$0]  %s416, 128, %s5, [#allocation4]
    $region41: #{tpu_custom_call.1} parent=1 // pred_fallthru
      _
    // Predicated region
    $region42: #{tpu_custom_call.1} parent=1 // pred_check
      _
    $region43: #{tpu_custom_call.1} parent=1 // pred_check_branch
      %420 = sbr.rel (0) target = $region45
    $region44: #{tpu_custom_call.1} parent=1 // pred_region
      %421 = dma.done [#allocation4], 128
    $region45: #{tpu_custom_call.1} parent=1 // pred_fallthru
      _
    %422 = vsyncpa [#allocation3], 1
    %423 = vsyncpa [#allocation6], 1
    %424 = vsyncpa [#allocation9], 1
    %425 = vsyncpa [#allocation4], 1

</llo_original>
